<compile_context>
chip_gen: v6e
topology: v6e:2x2x1
jax: 0.10.0
libtpu: 0.0.40
codegen_flags: <defaults>
</compile_context>

<pallas_src>
import functools

import jax
import jax.numpy as jnp
from jax.experimental import pallas as pl
from jax.experimental.pallas import tpu as pltpu


# Flat parameter layout (55 f32 values packed into a single SMEM slab):
#   w1 : (2, 10) row-major  -> offsets [ 0, 20)   w1[i, j] = flat[i*10 + j]
#   b1 : (10,)              -> offsets [20, 30)
#   w2 : (10, 2) row-major  -> offsets [30, 50)   w2[j, k] = flat[30 + 2*j + k]
#   b2 : (2,)               -> offsets [50, 52)
#   w3 : (2, 1)             -> offsets [52, 54)
#   b3 : (1,)               -> offset  54
_W1, _B1, _W2, _B2, _W3, _B3 = 0, 20, 30, 50, 52, 54
_N_PARAMS = 55
_LANE = 128


def _mlp_kernel(p_ref, x_ref, o_ref):
    # p_ref: (55,) f32 in SMEM (scalar reads -> broadcast FMAs on the VPU)
    # x_ref: (2, R, 128) f32 in VMEM -- batch dense on sublanes AND lanes
    # o_ref: (R, 128) f32 in VMEM -- lane/sublane-dense output
    x0 = x_ref[0]          # (R, 128)
    x1 = x_ref[1]          # (R, 128)

    # Fused fc1(+ReLU) / fc2 accumulation: each hidden unit hj is consumed
    # immediately into the two fc2 accumulators, so h1 never materializes.
    acc0 = None
    acc1 = None
    for j in range(10):
        hj = p_ref[_W1 + j] * x0 + p_ref[_W1 + 10 + j] * x1 + p_ref[_B1 + j]
        hj = jnp.maximum(hj, 0.0)
        t0 = p_ref[_W2 + 2 * j + 0] * hj
        t1 = p_ref[_W2 + 2 * j + 1] * hj
        acc0 = t0 if acc0 is None else acc0 + t0
        acc1 = t1 if acc1 is None else acc1 + t1

    # fc2 bias + ReLU
    h20 = jnp.maximum(acc0 + p_ref[_B2 + 0], 0.0)
    h21 = jnp.maximum(acc1 + p_ref[_B2 + 1], 0.0)

    # fc3 + cos
    y = p_ref[_W3] * h20 + p_ref[_W3 + 1] * h21 + p_ref[_B3]
    o_ref[...] = jnp.cos(y).astype(o_ref.dtype)


def _pack_params(params):
    return jnp.concatenate([
        params["w1"].reshape(-1),
        params["b1"].reshape(-1),
        params["w2"].reshape(-1),
        params["b2"].reshape(-1),
        params["w3"].reshape(-1),
        params["b3"].reshape(-1),
    ]).astype(jnp.float32)


def _net_forward_packed(x_packed, flat, *, rows_per_step):
    """x_packed: (2, rows, 128) f32 feature-major.  Returns (rows, 128) f32."""
    rows = x_packed.shape[1]
    if rows <= rows_per_step:
        # Single tile: block shape equals the full array dims -> always legal.
        r_tile, n_tiles = rows, 1
    else:
        r_tile = rows_per_step           # multiple of 8 by construction
        n_tiles = rows // r_tile         # caller guarantees divisibility

    return pl.pallas_call(
        _mlp_kernel,
        out_shape=jax.ShapeDtypeStruct((rows, _LANE), jnp.float32),
        grid=(n_tiles,),
        in_specs=[
            # Packed weights/biases: one flat slab, resident in SMEM for all
            # grid steps (55 scalar broadcasts per step are noise).
            pl.BlockSpec(memory_space=pltpu.MemorySpace.SMEM),
            # Activations: dense (2, R, 128) batch slab per step.
            pl.BlockSpec((2, r_tile, _LANE), lambda i: (0, i, 0)),
        ],
        out_specs=pl.BlockSpec((r_tile, _LANE), lambda i: (i, 0)),
        compiler_params=pltpu.CompilerParams(
            # Batch tiles are independent: shards across v7x's 2 TensorCores;
            # no-op on v5e/v6e.
            dimension_semantics=("parallel",),
        ),
    )(flat, x_packed)


def net_forward_packed(x_packed, params, *, rows_per_step=512):
    """Layout-native entry point: x_packed is (2, rows, 128) float32 with the
    batch laid out densely across (rows, 128).  rows must be <= rows_per_step
    or a multiple of rows_per_step (rows_per_step must be a multiple of 8).
    Returns (rows, 128) float32.  Avoids any wrapper transpose/pad passes."""
    flat = _pack_params(params)
    return _net_forward_packed(x_packed, flat, rows_per_step=rows_per_step)


@functools.partial(jax.jit, static_argnames=("rows_per_step",))
def net_forward(x, params, *, rows_per_step=512):
    """PyTorch-shaped convenience wrapper.
    x: (B, 2) float32.  params: dict of w1,b1,w2,b2,w3,b3.  Returns (B, 1).

    Note: this wrapper performs one pad+transpose of the activations to build
    the dense (2, rows, 128) layout; layout-native callers should use
    `net_forward_packed` to skip that extra HBM pass entirely.
    """
    assert rows_per_step % 8 == 0 and rows_per_step >= 8
    B = x.shape[0]
    flat = _pack_params(params)
    assert flat.shape == (_N_PARAMS,)

    # Round the batch up so it fills whole 128-lane rows, and so the number of
    # rows is either <= rows_per_step (single full-extent tile) or a multiple
    # of rows_per_step (evenly tiled grid -> balanced across TCs).
    rows = -(-B // _LANE)                                   # ceil(B / 128)
    if rows > rows_per_step:
        rows = -(-rows // rows_per_step) * rows_per_step    # pad to tile mult
    b_pad = rows * _LANE

    # Single fused pad + feature-major relayout: (B, 2) -> (2, rows, 128).
    xt = (jnp.zeros((2, b_pad), jnp.float32)
          .at[:, :B].set(x.T.astype(jnp.float32))
          .reshape(2, rows, _LANE))

    out = _net_forward_packed(xt, flat, rows_per_step=rows_per_step)

    # Back to the PyTorch (B, 1) shape; drop the padded tail.
    return out.reshape(b_pad)[:B][:, None]


def init_params(key):
    """Deterministic init matching the layer shapes of the PyTorch module."""
    k1, k2, k3, k4, k5, k6 = jax.random.split(key, 6)
    # PyTorch Linear weights are (out, in); we store (in, out) for x @ W.
    return {
        "w1": jax.random.uniform(k1, (2, 10), jnp.float32, -0.5, 0.5),
        "b1": jax.random.uniform(k2, (10,), jnp.float32, -0.5, 0.5),
        "w2": jax.random.uniform(k3, (10, 2), jnp.float32, -0.3, 0.3),
        "b2": jax.random.uniform(k4, (2,), jnp.float32, -0.3, 0.3),
        "w3": jax.random.uniform(k5, (2, 1), jnp.float32, -0.7, 0.7),
        "b3": jax.random.uniform(k6, (1,), jnp.float32, -0.7, 0.7),
    }


if __name__ == "__main__":
    key = jax.random.PRNGKey(0)
    kx, kp = jax.random.split(key)

    # Small demo batch, non-multiple of 128 so the padded-tail path runs.
    # rows_per_step=8 -> rows=16 -> 2 balanced grid tiles (exercises the
    # multi-tile / dual-TC path at small size).
    B = 2000
    x = jax.random.normal(kx, (B, 2), dtype=jnp.float32)
    params = init_params(kp)

    out = net_forward(x, params, rows_per_step=8)
    out = jax.block_until_ready(out)

    # Reference check in plain JAX (same math as the PyTorch module).
    h1 = jnp.maximum(x @ params["w1"] + params["b1"], 0.0)
    h2 = jnp.maximum(h1 @ params["w2"] + params["b2"], 0.0)
    ref = jnp.cos(h2 @ params["w3"] + params["b3"])

    assert out.shape == (B, 1)
    assert jnp.allclose(out, ref, atol=1e-4, rtol=1e-5), "mismatch vs reference"

    print("KERNEL_OK")
</pallas_src>

<mosaic_0001>
module attributes {stable_mosaic.version = 11 : i64} {
  func.func @_mlp_kernel(%arg0: i32, %arg1: memref<55xf32, #tpu.memory_space<smem>>, %arg2: memref<2x8x128xf32, #tpu.memory_space<vmem>>, %arg3: memref<8x128xf32, #tpu.memory_space<vmem>>) attributes {dimension_semantics = [#tpu.dimension_semantics<parallel>], iteration_bounds = array<i64: 2>, scalar_prefetch = 0 : i64, scratch_operands = 0 : i64, tpu.core_type = #tpu.core_type<tc>, window_params = [{transform_indices = @transform_0, window_bounds = array<i64: 55>}, {transform_indices = @transform_1, window_bounds = array<i64: 2, 8, 128>}, {transform_indices = @transform_2, window_bounds = array<i64: 8, 128>}]} {
    %c0 = arith.constant 0 : index
    %c0_0 = arith.constant 0 : index
    %c0_1 = arith.constant 0 : index
    %0 = vector.load %arg2[%c0, %c0_0, %c0_1] : memref<2x8x128xf32, #tpu.memory_space<vmem>>, vector<1x8x128xf32>
    %1 = vector.shape_cast %0 : vector<1x8x128xf32> to vector<8x128xf32>
    %c1 = arith.constant 1 : index
    %c0_2 = arith.constant 0 : index
    %c0_3 = arith.constant 0 : index
    %2 = vector.load %arg2[%c1, %c0_2, %c0_3] : memref<2x8x128xf32, #tpu.memory_space<vmem>>, vector<1x8x128xf32>
    %3 = vector.shape_cast %2 : vector<1x8x128xf32> to vector<8x128xf32>
    %c0_4 = arith.constant 0 : index
    %4 = memref.load %arg1[%c0_4] : memref<55xf32, #tpu.memory_space<smem>>
    %5 = vector.broadcast %4 : f32 to vector<8x128xf32>
    %6 = arith.mulf %5, %1 : vector<8x128xf32>
    %c10 = arith.constant 10 : index
    %7 = memref.load %arg1[%c10] : memref<55xf32, #tpu.memory_space<smem>>
    %8 = vector.broadcast %7 : f32 to vector<8x128xf32>
    %9 = arith.mulf %8, %3 : vector<8x128xf32>
    %10 = arith.addf %6, %9 : vector<8x128xf32>
    %c20 = arith.constant 20 : index
    %11 = memref.load %arg1[%c20] : memref<55xf32, #tpu.memory_space<smem>>
    %12 = vector.broadcast %11 : f32 to vector<8x128xf32>
    %13 = arith.addf %10, %12 : vector<8x128xf32>
    %cst = arith.constant 0.000000e+00 : f32
    %14 = vector.broadcast %cst : f32 to vector<8x128xf32>
    %15 = arith.maximumf %13, %14 : vector<8x128xf32>
    %c30 = arith.constant 30 : index
    %16 = memref.load %arg1[%c30] : memref<55xf32, #tpu.memory_space<smem>>
    %17 = vector.broadcast %16 : f32 to vector<8x128xf32>
    %18 = arith.mulf %17, %15 : vector<8x128xf32>
    %c31 = arith.constant 31 : index
    %19 = memref.load %arg1[%c31] : memref<55xf32, #tpu.memory_space<smem>>
    %20 = vector.broadcast %19 : f32 to vector<8x128xf32>
    %21 = arith.mulf %20, %15 : vector<8x128xf32>
    %c1_5 = arith.constant 1 : index
    %22 = memref.load %arg1[%c1_5] : memref<55xf32, #tpu.memory_space<smem>>
    %23 = vector.broadcast %22 : f32 to vector<8x128xf32>
    %24 = arith.mulf %23, %1 : vector<8x128xf32>
    %c11 = arith.constant 11 : index
    %25 = memref.load %arg1[%c11] : memref<55xf32, #tpu.memory_space<smem>>
    %26 = vector.broadcast %25 : f32 to vector<8x128xf32>
    %27 = arith.mulf %26, %3 : vector<8x128xf32>
    %28 = arith.addf %24, %27 : vector<8x128xf32>
    %c21 = arith.constant 21 : index
    %29 = memref.load %arg1[%c21] : memref<55xf32, #tpu.memory_space<smem>>
    %30 = vector.broadcast %29 : f32 to vector<8x128xf32>
    %31 = arith.addf %28, %30 : vector<8x128xf32>
    %cst_6 = arith.constant 0.000000e+00 : f32
    %32 = vector.broadcast %cst_6 : f32 to vector<8x128xf32>
    %33 = arith.maximumf %31, %32 : vector<8x128xf32>
    %c32 = arith.constant 32 : index
    %34 = memref.load %arg1[%c32] : memref<55xf32, #tpu.memory_space<smem>>
    %35 = vector.broadcast %34 : f32 to vector<8x128xf32>
    %36 = arith.mulf %35, %33 : vector<8x128xf32>
    %c33 = arith.constant 33 : index
    %37 = memref.load %arg1[%c33] : memref<55xf32, #tpu.memory_space<smem>>
    %38 = vector.broadcast %37 : f32 to vector<8x128xf32>
    %39 = arith.mulf %38, %33 : vector<8x128xf32>
    %40 = arith.addf %18, %36 : vector<8x128xf32>
    %41 = arith.addf %21, %39 : vector<8x128xf32>
    %c2 = arith.constant 2 : index
    %42 = memref.load %arg1[%c2] : memref<55xf32, #tpu.memory_space<smem>>
    %43 = vector.broadcast %42 : f32 to vector<8x128xf32>
    %44 = arith.mulf %43, %1 : vector<8x128xf32>
    %c12 = arith.constant 12 : index
    %45 = memref.load %arg1[%c12] : memref<55xf32, #tpu.memory_space<smem>>
    %46 = vector.broadcast %45 : f32 to vector<8x128xf32>
    %47 = arith.mulf %46, %3 : vector<8x128xf32>
    %48 = arith.addf %44, %47 : vector<8x128xf32>
    %c22 = arith.constant 22 : index
    %49 = memref.load %arg1[%c22] : memref<55xf32, #tpu.memory_space<smem>>
    %50 = vector.broadcast %49 : f32 to vector<8x128xf32>
    %51 = arith.addf %48, %50 : vector<8x128xf32>
    %cst_7 = arith.constant 0.000000e+00 : f32
    %52 = vector.broadcast %cst_7 : f32 to vector<8x128xf32>
    %53 = arith.maximumf %51, %52 : vector<8x128xf32>
    %c34 = arith.constant 34 : index
    %54 = memref.load %arg1[%c34] : memref<55xf32, #tpu.memory_space<smem>>
    %55 = vector.broadcast %54 : f32 to vector<8x128xf32>
    %56 = arith.mulf %55, %53 : vector<8x128xf32>
    %c35 = arith.constant 35 : index
    %57 = memref.load %arg1[%c35] : memref<55xf32, #tpu.memory_space<smem>>
    %58 = vector.broadcast %57 : f32 to vector<8x128xf32>
    %59 = arith.mulf %58, %53 : vector<8x128xf32>
    %60 = arith.addf %40, %56 : vector<8x128xf32>
    %61 = arith.addf %41, %59 : vector<8x128xf32>
    %c3 = arith.constant 3 : index
    %62 = memref.load %arg1[%c3] : memref<55xf32, #tpu.memory_space<smem>>
    %63 = vector.broadcast %62 : f32 to vector<8x128xf32>
    %64 = arith.mulf %63, %1 : vector<8x128xf32>
    %c13 = arith.constant 13 : index
    %65 = memref.load %arg1[%c13] : memref<55xf32, #tpu.memory_space<smem>>
    %66 = vector.broadcast %65 : f32 to vector<8x128xf32>
    %67 = arith.mulf %66, %3 : vector<8x128xf32>
    %68 = arith.addf %64, %67 : vector<8x128xf32>
    %c23 = arith.constant 23 : index
    %69 = memref.load %arg1[%c23] : memref<55xf32, #tpu.memory_space<smem>>
    %70 = vector.broadcast %69 : f32 to vector<8x128xf32>
    %71 = arith.addf %68, %70 : vector<8x128xf32>
    %cst_8 = arith.constant 0.000000e+00 : f32
    %72 = vector.broadcast %cst_8 : f32 to vector<8x128xf32>
    %73 = arith.maximumf %71, %72 : vector<8x128xf32>
    %c36 = arith.constant 36 : index
    %74 = memref.load %arg1[%c36] : memref<55xf32, #tpu.memory_space<smem>>
    %75 = vector.broadcast %74 : f32 to vector<8x128xf32>
    %76 = arith.mulf %75, %73 : vector<8x128xf32>
    %c37 = arith.constant 37 : index
    %77 = memref.load %arg1[%c37] : memref<55xf32, #tpu.memory_space<smem>>
    %78 = vector.broadcast %77 : f32 to vector<8x128xf32>
    %79 = arith.mulf %78, %73 : vector<8x128xf32>
    %80 = arith.addf %60, %76 : vector<8x128xf32>
    %81 = arith.addf %61, %79 : vector<8x128xf32>
    %c4 = arith.constant 4 : index
    %82 = memref.load %arg1[%c4] : memref<55xf32, #tpu.memory_space<smem>>
    %83 = vector.broadcast %82 : f32 to vector<8x128xf32>
    %84 = arith.mulf %83, %1 : vector<8x128xf32>
    %c14 = arith.constant 14 : index
    %85 = memref.load %arg1[%c14] : memref<55xf32, #tpu.memory_space<smem>>
    %86 = vector.broadcast %85 : f32 to vector<8x128xf32>
    %87 = arith.mulf %86, %3 : vector<8x128xf32>
    %88 = arith.addf %84, %87 : vector<8x128xf32>
    %c24 = arith.constant 24 : index
    %89 = memref.load %arg1[%c24] : memref<55xf32, #tpu.memory_space<smem>>
    %90 = vector.broadcast %89 : f32 to vector<8x128xf32>
    %91 = arith.addf %88, %90 : vector<8x128xf32>
    %cst_9 = arith.constant 0.000000e+00 : f32
    %92 = vector.broadcast %cst_9 : f32 to vector<8x128xf32>
    %93 = arith.maximumf %91, %92 : vector<8x128xf32>
    %c38 = arith.constant 38 : index
    %94 = memref.load %arg1[%c38] : memref<55xf32, #tpu.memory_space<smem>>
    %95 = vector.broadcast %94 : f32 to vector<8x128xf32>
    %96 = arith.mulf %95, %93 : vector<8x128xf32>
    %c39 = arith.constant 39 : index
    %97 = memref.load %arg1[%c39] : memref<55xf32, #tpu.memory_space<smem>>
    %98 = vector.broadcast %97 : f32 to vector<8x128xf32>
    %99 = arith.mulf %98, %93 : vector<8x128xf32>
    %100 = arith.addf %80, %96 : vector<8x128xf32>
    %101 = arith.addf %81, %99 : vector<8x128xf32>
    %c5 = arith.constant 5 : index
    %102 = memref.load %arg1[%c5] : memref<55xf32, #tpu.memory_space<smem>>
    %103 = vector.broadcast %102 : f32 to vector<8x128xf32>
    %104 = arith.mulf %103, %1 : vector<8x128xf32>
    %c15 = arith.constant 15 : index
    %105 = memref.load %arg1[%c15] : memref<55xf32, #tpu.memory_space<smem>>
    %106 = vector.broadcast %105 : f32 to vector<8x128xf32>
    %107 = arith.mulf %106, %3 : vector<8x128xf32>
    %108 = arith.addf %104, %107 : vector<8x128xf32>
    %c25 = arith.constant 25 : index
    %109 = memref.load %arg1[%c25] : memref<55xf32, #tpu.memory_space<smem>>
    %110 = vector.broadcast %109 : f32 to vector<8x128xf32>
    %111 = arith.addf %108, %110 : vector<8x128xf32>
    %cst_10 = arith.constant 0.000000e+00 : f32
    %112 = vector.broadcast %cst_10 : f32 to vector<8x128xf32>
    %113 = arith.maximumf %111, %112 : vector<8x128xf32>
    %c40 = arith.constant 40 : index
    %114 = memref.load %arg1[%c40] : memref<55xf32, #tpu.memory_space<smem>>
    %115 = vector.broadcast %114 : f32 to vector<8x128xf32>
    %116 = arith.mulf %115, %113 : vector<8x128xf32>
    %c41 = arith.constant 41 : index
    %117 = memref.load %arg1[%c41] : memref<55xf32, #tpu.memory_space<smem>>
    %118 = vector.broadcast %117 : f32 to vector<8x128xf32>
    %119 = arith.mulf %118, %113 : vector<8x128xf32>
    %120 = arith.addf %100, %116 : vector<8x128xf32>
    %121 = arith.addf %101, %119 : vector<8x128xf32>
    %c6 = arith.constant 6 : index
    %122 = memref.load %arg1[%c6] : memref<55xf32, #tpu.memory_space<smem>>
    %123 = vector.broadcast %122 : f32 to vector<8x128xf32>
    %124 = arith.mulf %123, %1 : vector<8x128xf32>
    %c16 = arith.constant 16 : index
    %125 = memref.load %arg1[%c16] : memref<55xf32, #tpu.memory_space<smem>>
    %126 = vector.broadcast %125 : f32 to vector<8x128xf32>
    %127 = arith.mulf %126, %3 : vector<8x128xf32>
    %128 = arith.addf %124, %127 : vector<8x128xf32>
    %c26 = arith.constant 26 : index
    %129 = memref.load %arg1[%c26] : memref<55xf32, #tpu.memory_space<smem>>
    %130 = vector.broadcast %129 : f32 to vector<8x128xf32>
    %131 = arith.addf %128, %130 : vector<8x128xf32>
    %cst_11 = arith.constant 0.000000e+00 : f32
    %132 = vector.broadcast %cst_11 : f32 to vector<8x128xf32>
    %133 = arith.maximumf %131, %132 : vector<8x128xf32>
    %c42 = arith.constant 42 : index
    %134 = memref.load %arg1[%c42] : memref<55xf32, #tpu.memory_space<smem>>
    %135 = vector.broadcast %134 : f32 to vector<8x128xf32>
    %136 = arith.mulf %135, %133 : vector<8x128xf32>
    %c43 = arith.constant 43 : index
    %137 = memref.load %arg1[%c43] : memref<55xf32, #tpu.memory_space<smem>>
    %138 = vector.broadcast %137 : f32 to vector<8x128xf32>
    %139 = arith.mulf %138, %133 : vector<8x128xf32>
    %140 = arith.addf %120, %136 : vector<8x128xf32>
    %141 = arith.addf %121, %139 : vector<8x128xf32>
    %c7 = arith.constant 7 : index
    %142 = memref.load %arg1[%c7] : memref<55xf32, #tpu.memory_space<smem>>
    %143 = vector.broadcast %142 : f32 to vector<8x128xf32>
    %144 = arith.mulf %143, %1 : vector<8x128xf32>
    %c17 = arith.constant 17 : index
    %145 = memref.load %arg1[%c17] : memref<55xf32, #tpu.memory_space<smem>>
    %146 = vector.broadcast %145 : f32 to vector<8x128xf32>
    %147 = arith.mulf %146, %3 : vector<8x128xf32>
    %148 = arith.addf %144, %147 : vector<8x128xf32>
    %c27 = arith.constant 27 : index
    %149 = memref.load %arg1[%c27] : memref<55xf32, #tpu.memory_space<smem>>
    %150 = vector.broadcast %149 : f32 to vector<8x128xf32>
    %151 = arith.addf %148, %150 : vector<8x128xf32>
    %cst_12 = arith.constant 0.000000e+00 : f32
    %152 = vector.broadcast %cst_12 : f32 to vector<8x128xf32>
    %153 = arith.maximumf %151, %152 : vector<8x128xf32>
    %c44 = arith.constant 44 : index
    %154 = memref.load %arg1[%c44] : memref<55xf32, #tpu.memory_space<smem>>
    %155 = vector.broadcast %154 : f32 to vector<8x128xf32>
    %156 = arith.mulf %155, %153 : vector<8x128xf32>
    %c45 = arith.constant 45 : index
    %157 = memref.load %arg1[%c45] : memref<55xf32, #tpu.memory_space<smem>>
    %158 = vector.broadcast %157 : f32 to vector<8x128xf32>
    %159 = arith.mulf %158, %153 : vector<8x128xf32>
    %160 = arith.addf %140, %156 : vector<8x128xf32>
    %161 = arith.addf %141, %159 : vector<8x128xf32>
    %c8 = arith.constant 8 : index
    %162 = memref.load %arg1[%c8] : memref<55xf32, #tpu.memory_space<smem>>
    %163 = vector.broadcast %162 : f32 to vector<8x128xf32>
    %164 = arith.mulf %163, %1 : vector<8x128xf32>
    %c18 = arith.constant 18 : index
    %165 = memref.load %arg1[%c18] : memref<55xf32, #tpu.memory_space<smem>>
    %166 = vector.broadcast %165 : f32 to vector<8x128xf32>
    %167 = arith.mulf %166, %3 : vector<8x128xf32>
    %168 = arith.addf %164, %167 : vector<8x128xf32>
    %c28 = arith.constant 28 : index
    %169 = memref.load %arg1[%c28] : memref<55xf32, #tpu.memory_space<smem>>
    %170 = vector.broadcast %169 : f32 to vector<8x128xf32>
    %171 = arith.addf %168, %170 : vector<8x128xf32>
    %cst_13 = arith.constant 0.000000e+00 : f32
    %172 = vector.broadcast %cst_13 : f32 to vector<8x128xf32>
    %173 = arith.maximumf %171, %172 : vector<8x128xf32>
    %c46 = arith.constant 46 : index
    %174 = memref.load %arg1[%c46] : memref<55xf32, #tpu.memory_space<smem>>
    %175 = vector.broadcast %174 : f32 to vector<8x128xf32>
    %176 = arith.mulf %175, %173 : vector<8x128xf32>
    %c47 = arith.constant 47 : index
    %177 = memref.load %arg1[%c47] : memref<55xf32, #tpu.memory_space<smem>>
    %178 = vector.broadcast %177 : f32 to vector<8x128xf32>
    %179 = arith.mulf %178, %173 : vector<8x128xf32>
    %180 = arith.addf %160, %176 : vector<8x128xf32>
    %181 = arith.addf %161, %179 : vector<8x128xf32>
    %c9 = arith.constant 9 : index
    %182 = memref.load %arg1[%c9] : memref<55xf32, #tpu.memory_space<smem>>
    %183 = vector.broadcast %182 : f32 to vector<8x128xf32>
    %184 = arith.mulf %183, %1 : vector<8x128xf32>
    %c19 = arith.constant 19 : index
    %185 = memref.load %arg1[%c19] : memref<55xf32, #tpu.memory_space<smem>>
    %186 = vector.broadcast %185 : f32 to vector<8x128xf32>
    %187 = arith.mulf %186, %3 : vector<8x128xf32>
    %188 = arith.addf %184, %187 : vector<8x128xf32>
    %c29 = arith.constant 29 : index
    %189 = memref.load %arg1[%c29] : memref<55xf32, #tpu.memory_space<smem>>
    %190 = vector.broadcast %189 : f32 to vector<8x128xf32>
    %191 = arith.addf %188, %190 : vector<8x128xf32>
    %cst_14 = arith.constant 0.000000e+00 : f32
    %192 = vector.broadcast %cst_14 : f32 to vector<8x128xf32>
    %193 = arith.maximumf %191, %192 : vector<8x128xf32>
    %c48 = arith.constant 48 : index
    %194 = memref.load %arg1[%c48] : memref<55xf32, #tpu.memory_space<smem>>
    %195 = vector.broadcast %194 : f32 to vector<8x128xf32>
    %196 = arith.mulf %195, %193 : vector<8x128xf32>
    %c49 = arith.constant 49 : index
    %197 = memref.load %arg1[%c49] : memref<55xf32, #tpu.memory_space<smem>>
    %198 = vector.broadcast %197 : f32 to vector<8x128xf32>
    %199 = arith.mulf %198, %193 : vector<8x128xf32>
    %200 = arith.addf %180, %196 : vector<8x128xf32>
    %201 = arith.addf %181, %199 : vector<8x128xf32>
    %c50 = arith.constant 50 : index
    %202 = memref.load %arg1[%c50] : memref<55xf32, #tpu.memory_space<smem>>
    %203 = vector.broadcast %202 : f32 to vector<8x128xf32>
    %204 = arith.addf %200, %203 : vector<8x128xf32>
    %cst_15 = arith.constant 0.000000e+00 : f32
    %205 = vector.broadcast %cst_15 : f32 to vector<8x128xf32>
    %206 = arith.maximumf %204, %205 : vector<8x128xf32>
    %c51 = arith.constant 51 : index
    %207 = memref.load %arg1[%c51] : memref<55xf32, #tpu.memory_space<smem>>
    %208 = vector.broadcast %207 : f32 to vector<8x128xf32>
    %209 = arith.addf %201, %208 : vector<8x128xf32>
    %cst_16 = arith.constant 0.000000e+00 : f32
    %210 = vector.broadcast %cst_16 : f32 to vector<8x128xf32>
    %211 = arith.maximumf %209, %210 : vector<8x128xf32>
    %c52 = arith.constant 52 : index
    %212 = memref.load %arg1[%c52] : memref<55xf32, #tpu.memory_space<smem>>
    %213 = vector.broadcast %212 : f32 to vector<8x128xf32>
    %214 = arith.mulf %213, %206 : vector<8x128xf32>
    %c53 = arith.constant 53 : index
    %215 = memref.load %arg1[%c53] : memref<55xf32, #tpu.memory_space<smem>>
    %216 = vector.broadcast %215 : f32 to vector<8x128xf32>
    %217 = arith.mulf %216, %211 : vector<8x128xf32>
    %218 = arith.addf %214, %217 : vector<8x128xf32>
    %c54 = arith.constant 54 : index
    %219 = memref.load %arg1[%c54] : memref<55xf32, #tpu.memory_space<smem>>
    %220 = vector.broadcast %219 : f32 to vector<8x128xf32>
    %221 = arith.addf %218, %220 : vector<8x128xf32>
    %222 = math.cos %221 : vector<8x128xf32>
    %c0_17 = arith.constant 0 : index
    %c0_18 = arith.constant 0 : index
    %223 = vector.load %arg3[%c0_17, %c0_18] : memref<8x128xf32, #tpu.memory_space<vmem>>, vector<8x128xf32>
    tpu.vector_store %arg3[%c0_17, %c0_18], %222 {strides = array<i32>} : memref<8x128xf32, #tpu.memory_space<vmem>>, vector<8x128xf32>,
    return
  }
  func.func @transform_0(%arg0: i32) -> i32 {
    %c0_i32 = arith.constant 0 : i32
    %c0_i32_0 = arith.constant 0 : i32
    return %c0_i32 : i32
  }
  func.func @transform_1(%arg0: i32) -> (i32, i32, i32) {
    %c0_i32 = arith.constant 0 : i32
    %c0_i32_0 = arith.constant 0 : i32
    %c0_i32_1 = arith.constant 0 : i32
    return %c0_i32, %arg0, %c0_i32_0 : i32, i32, i32
  }
  func.func @transform_2(%arg0: i32) -> (i32, i32) {
    %c0_i32 = arith.constant 0 : i32
    %c0_i32_0 = arith.constant 0 : i32
    return %arg0, %c0_i32 : i32, i32
  }
}

</mosaic_0001>

<llo_original>
// kernel: net_forward.1
$region0: #{net_forward.1}
  #allocation0 [shape = 'u32[]', space=smem, size = 0x4, offset = 0x4, fixed_abs, tag = 'smem constant byte address 0x4 - core index']
  #allocation1 [shape = 'u32[144,128]{1,0:T(1,128)}', space=vmem, size = 0x12000, scoped, tag = 'internal scratch']
  %s0 = inlined_call_operand.vmem [shape: f32[55], index: 0, kind: input, shape index: {}]
  %s1 = inlined_call_operand.vmem [shape: f32[2,16,128], index: 1, kind: input, shape index: {}]
  %s2 = inlined_call_operand.hbm [shape: f32[16,128], index: 2, kind: output, shape index: {}]
  %s3 = sld [smem:[#allocation0]]
  $region83: #{net_forward.1} parent=0
    _
  %s5 = ssub.s32 1, %s3
  %s6 = scalar_select 0, %s5, %s3
  $region1: #{net_forward.1} parent=0
    #allocation2 [shape = 'u8[512]{0}', space=smem, size = 0x200, scoped, tag = 'input window, operand 0, single buffered']
    #allocation3 [shape = 's32[2]{0}', space=sflag, size = 0x8, scoped, tag = 'scoped memory for net_forward.1']
    #allocation4 [shape = 's32[2]{0}', space=sflag, size = 0x8, scoped, tag = 'scoped memory for net_forward.1']
    #allocation5 [shape = 'u8[16384]{0}', space=vmem, size = 0x4000, scoped, tag = 'input window, operand 1']
    #allocation6 [shape = 'u8[8192]{0}', space=vmem, size = 0x2000, scoped, tag = 'output window, operand 0']
    %7 = vsyncpa [#allocation4], 0
    %8 = vsyncpa [#allocation3], 0
    %s9 = scalar_lea.sflag [#allocation3], 1
    %10 = vsyncpa %s9, 0
    loop: start=0, step=1, limit=4
    $region2: #{net_forward.1} parent=1 // loop_pre_header
      _
    $region3: #{net_forward.1} parent=1 // loop_header
      %s12 = sphi 0, %s16
      %p13 = scmp.ge.s32.totalorder %s12, 4
      %s20 = sphi 0, %s20
      %s22 = sphi 0, %s20
      %s23 = sphi 0, %s22
      %s37 = sphi 0, %s23
      %s43 = sphi 0, %s45
      %s46 = sphi 0, %s43
      %s47 = sphi 0, %s46
      %s63 = sphi 0, %s47
      %s69 = sphi 0, %s71
      %s72 = sphi 0, %s69
      %s73 = sphi 0, %s72
      %s89 = sphi 0, %s73
    $region4: #{net_forward.1} parent=1 // loop_header_branch
      %15 = sbr.rel (%p13) target = $region8
    $region5: #{net_forward.1} parent=1 // loop_body
      %s17 = ssub.s32 %s12, 1
      %s18 = ssub.s32 %s12, 2
      %s19 = sadd.s32 %s12, 1
      %s21 = sadd.s32 %s20, 1
      %p24 = scmp.eq.s32.totalorder %s12, 1
      %p25 = scmp.ne.s32.totalorder %s20, %s22
      %p26 = scmp.eq.s32.totalorder %s12, 0
      %p27 = por %p25, %p26
      %p28 = scmp.ne.s32.totalorder %s20, %s22
      %p29 = scmp.eq.s32.totalorder %s17, 1
      %p30 = por %p28, %p29
      %p31 = scmp.ne.s32.totalorder %s22, %s23
      %p32 = scmp.eq.s32.totalorder %s17, 0
      %p33 = por %p31, %p32
      %p34 = scmp.ne.s32.totalorder %s22, %s23
      %p35 = scmp.eq.s32.totalorder %s18, 1
      %p36 = por %p34, %p35
      %p38 = scmp.ne.s32.totalorder %s23, %s37
      %p39 = scmp.eq.s32.totalorder %s18, 0
      %p40 = por %p38, %p39
      %s41 = ssub.s32 %s12, %s19
      %p42 = scmp.eq.s32.totalorder %s41, 0
      %s44 = sadd.s32 %s43, 1
      %s45 = scalar_select %p42, %s43, %s44
      %p48 = pneg %p42
      %p49 = scmp.eq.s32.totalorder %s12, 1
      %p50 = por %p48, %p49
      %p51 = scmp.ne.s32.totalorder %s43, %s46
      %p52 = scmp.eq.s32.totalorder %s12, 0
      %p53 = por %p51, %p52
      %p54 = scmp.ne.s32.totalorder %s43, %s46
      %p55 = scmp.eq.s32.totalorder %s17, 1
      %p56 = por %p54, %p55
      %p57 = scmp.ne.s32.totalorder %s46, %s47
      %p58 = scmp.eq.s32.totalorder %s17, 0
      %p59 = por %p57, %p58
      %p60 = scmp.ne.s32.totalorder %s46, %s47
      %p61 = scmp.eq.s32.totalorder %s18, 1
      %p62 = por %p60, %p61
      %p64 = scmp.ne.s32.totalorder %s47, %s63
      %p65 = scmp.eq.s32.totalorder %s18, 0
      %p66 = por %p64, %p65
      %s67 = ssub.s32 %s12, %s19
      %p68 = scmp.eq.s32.totalorder %s67, 0
      %s70 = sadd.s32 %s69, 1
      %s71 = scalar_select %p68, %s69, %s70
      %p74 = pneg %p68
      %p75 = scmp.eq.s32.totalorder %s12, 1
      %p76 = por %p74, %p75
      %p77 = scmp.ne.s32.totalorder %s69, %s72
      %p78 = scmp.eq.s32.totalorder %s12, 0
      %p79 = por %p77, %p78
      %p80 = scmp.ne.s32.totalorder %s69, %s72
      %p81 = scmp.eq.s32.totalorder %s17, 1
      %p82 = por %p80, %p81
      %p83 = scmp.ne.s32.totalorder %s72, %s73
      %p84 = scmp.eq.s32.totalorder %s17, 0
      %p85 = por %p83, %p84
      %p86 = scmp.ne.s32.totalorder %s72, %s73
      %p87 = scmp.eq.s32.totalorder %s18, 1
      %p88 = por %p86, %p87
      %p90 = scmp.ne.s32.totalorder %s73, %s89
      %p91 = scmp.eq.s32.totalorder %s18, 0
      %p92 = por %p90, %p91
      %p93 = scmp.le.s32.totalorder 1, %s12
      %p94 = scmp.lt.s32.totalorder %s12, 3
      %p95 = pnand %p93, %p94
      %p96 = pneg %p95
      // Predicated region
      $region9: #{net_forward.1} parent=5 // pred_check
        _
      $region10: #{net_forward.1} parent=5 // pred_check_branch
        %98 = sbr.rel (%p95) target = $region12
      $region11: #{net_forward.1} parent=5 // pred_region
        %s99 = ssub.s32 %s12, 1
        // Predicated region
        $region13: #{net_forward.1} parent=11 // pred_check
          %p100 = pneg %p33
        $region14: #{net_forward.1} parent=11 // pred_check_branch
          %102 = sbr.rel (%p100) target = $region16
        $region15: #{net_forward.1} parent=11 // pred_region
          %s104 = ssub.s32 16, 16
          %105 = vsyncadd [#allocation4], %s104
          %s107 = sshll.u32 %s0, 4
          %s108 = int_to_ptr.vmem [resolvable:$true] %s107
          %110 = dma.vmem_to_smem %s108, 16, [#allocation2], [#allocation4]
        $region16: #{net_forward.1} parent=11 // pred_fallthru
          _
      $region12: #{net_forward.1} parent=5 // pred_fallthru
        _
      %p111 = scmp.lt.s32.totalorder %s12, 2
      // Predicated region
      $region17: #{net_forward.1} parent=5 // pred_check
        %p112 = pneg %p111
      $region18: #{net_forward.1} parent=5 // pred_check_branch
        %114 = sbr.rel (%p112) target = $region20
      $region19: #{net_forward.1} parent=5 // pred_region
        // Predicated region
        $region21: #{net_forward.1} parent=19 // pred_check
          %p115 = pneg %p53
        $region22: #{net_forward.1} parent=19 // pred_check_branch
          %117 = sbr.rel (%p115) target = $region24
        $region23: #{net_forward.1} parent=19 // pred_region
          %s118 = sand.u32 %s43, 1
          %s119 = sand.u32 %s43, 1
          %s120 = smul.addr %s119, 16
          %s121 = scalar_lea.vmem [#allocation5], %s120
          %s122 = smul.addr %s12, 8
          %s123 = scalar_lea.vmem %s1, %s122
          // Predicated region
          $region25: #{net_forward.1} parent=23 // pred_check
            _
          $region26: #{net_forward.1} parent=23 // pred_check_branch
            %125 = sbr.rel (0) target = $region28
          $region27: #{net_forward.1} parent=23 // pred_region
            // Predicated region
            $region29: #{net_forward.1} parent=27 // pred_check
              _
            $region30: #{net_forward.1} parent=27 // pred_check_branch
              %127 = sbr.rel (0) target = $region32
            $region31: #{net_forward.1} parent=27 // pred_region
              // Predicated region
              $region44: #{net_forward.1} parent=31 // pred_check
                _
              $region45: #{net_forward.1} parent=31 // pred_check_branch
                %145 = sbr.rel (0) target = $region47
              $region46: #{net_forward.1} parent=31 // pred_region
                loop: start=0, step=1, limit=1
                $region48: #{net_forward.1} parent=46 // loop_pre_header
                  _
                $region49: #{net_forward.1} parent=46 // loop_header
                  %s147 = sphi 0, %s151
                  %p148 = scmp.ge.s32.totalorder %s147, 1
                  %s152 = sphi %s123, %s123
                  %s153 = sphi %s121, %s121
                $region50: #{net_forward.1} parent=46 // loop_header_branch
                  %150 = sbr.rel (%p148) target = $region54
                $region51: #{net_forward.1} parent=46 // loop_body
                  %v154 = vld [vmem:[%s152] sm:$0xff]
                  %155 = vst [vmem:[%s153] sm:$0xff] %v154
                  %v156 = vld [vmem:[%s152 + $0x10] sm:$0xff]
                  %157 = vst [vmem:[%s153 + $0x8] sm:$0xff] %v156
                $region52: #{net_forward.1} parent=46 // loop_footer
                  %s151 = sadd.s32 1, %s147
                $region53: #{net_forward.1} parent=46 // loop_footer_branch
                  %146 = sbr.rel target = $region49
                $region54: #{net_forward.1} parent=46 // loop_exit
                  _
              $region47: #{net_forward.1} parent=31 // pred_fallthru
                _
              // Predicated region
              $region55: #{net_forward.1} parent=31 // pred_check
                _
              $region56: #{net_forward.1} parent=31 // pred_check_branch
                %159 = sbr.rel target = $region58
              $region57: #{net_forward.1} parent=31 // pred_region
                _
              $region58: #{net_forward.1} parent=31 // pred_fallthru
                _
            $region32: #{net_forward.1} parent=27 // pred_fallthru
              _
            // Predicated region
            $region33: #{net_forward.1} parent=27 // pred_check
              _
            $region34: #{net_forward.1} parent=27 // pred_check_branch
              %129 = sbr.rel target = $region36
            $region35: #{net_forward.1} parent=27 // pred_region
              %s131 = ssub.s32 256, 1
              loop: start=0, step=1, limit=1
              $region37: #{net_forward.1} parent=35 // loop_pre_header
                _
              $region38: #{net_forward.1} parent=35 // loop_header
                %s133 = sphi 0, %s137
                %p134 = scmp.ge.s32.totalorder %s133, 1
                %s138 = sphi %s123, %s123
                %s139 = sphi %s121, %s121
              $region39: #{net_forward.1} parent=35 // loop_header_branch
                %136 = sbr.rel (%p134) target = $region43
              $region40: #{net_forward.1} parent=35 // loop_body
                %v140 = vld [vmem:[%s138] sm:%s131]
                %141 = vst [vmem:[%s139] sm:%s131] %v140
                %v142 = vld [vmem:[%s138 + $0x10] sm:%s131]
                %143 = vst [vmem:[%s139 + $0x8] sm:%s131] %v142
              $region41: #{net_forward.1} parent=35 // loop_footer
                %s137 = sadd.s32 1, %s133
              $region42: #{net_forward.1} parent=35 // loop_footer_branch
                %132 = sbr.rel target = $region38
              $region43: #{net_forward.1} parent=35 // loop_exit
                _
            $region36: #{net_forward.1} parent=27 // pred_fallthru
              _
          $region28: #{net_forward.1} parent=23 // pred_fallthru
            _
          %160 = vnop
        $region24: #{net_forward.1} parent=19 // pred_fallthru
          _
      $region20: #{net_forward.1} parent=5 // pred_fallthru
        _
      %p161 = scmp.le.s32.totalorder 1, %s12
      %p162 = scmp.lt.s32.totalorder %s12, 3
      %p163 = pnand %p161, %p162
      %p164 = pneg %p163
      // Predicated region
      $region59: #{net_forward.1} parent=5 // pred_check
        _
      $region60: #{net_forward.1} parent=5 // pred_check_branch
        %166 = sbr.rel (%p163) target = $region62
      $region61: #{net_forward.1} parent=5 // pred_region
        %s167 = ssub.s32 %s12, 1
        // Predicated region
        $region63: #{net_forward.1} parent=61 // pred_check
          %p168 = pneg %p33
        $region64: #{net_forward.1} parent=61 // pred_check_branch
          %170 = sbr.rel (%p168) target = $region66
        $region65: #{net_forward.1} parent=61 // pred_region
          %171 = dma.done [#allocation4], 16
        $region66: #{net_forward.1} parent=61 // pred_fallthru
          _
        %s172 = sand.u32 %s46, 1
        %s173 = sand.u32 %s46, 1
        %s174 = smul.addr %s173, 16
        %s175 = scalar_lea.vmem [#allocation5], %s174
        // Predicated region
        $region67: #{net_forward.1} parent=61 // pred_check
          %p176 = pneg %p59
        $region68: #{net_forward.1} parent=61 // pred_check_branch
          %178 = sbr.rel (%p176) target = $region70
        $region69: #{net_forward.1} parent=61 // pred_region
          _
        $region70: #{net_forward.1} parent=61 // pred_fallthru
          _
        %179 = sfence
        %p180 = pneg %p33
        %p181 = pneg %p30
        %s182 = sand.u32 %s46, 1
        %s183 = sand.u32 %s46, 1
        %s184 = smul.addr %s183, 16
        %s185 = scalar_lea.vmem [#allocation5], %s184
        %p186 = pneg %p59
        %p187 = pneg %p56
        %p188 = pneg %p85
        %p189 = pneg %p82
        %s190 = sand.u32 %s72, 1
        %s191 = scalar_lea.sflag [#allocation3], %s190
        %s192 = sand.u32 %s72, 1
        %s193 = smul.addr %s192, 8
        %s194 = scalar_lea.vmem [#allocation6], %s193
        %v195 = vld [vmem:[%s175] sm:$0xff]
        %s196 = scalar_lea.vmem %s175, 8 [#allocation5]
        %v197 = vld [vmem:[%s196] sm:$0xff]
        %s198 = sld [smem:[#allocation2]]
        %v199 = vstv %s198
        %v200 = vmul.f32 %v199, %v195
        %s201 = sld [smem:[#allocation2 + $0xa]]
        %v202 = vstv %s201
        %v203 = vmul.f32 %v202, %v197
        %v204 = vadd.f32 %v200, %v203
        %s205 = sld [smem:[#allocation2 + $0x14]]
        %v206 = vstv %s205
        %v207 = vadd.f32 %v204, %v206
        %v208 = vmax.f32 %v207, 0.0
        %s209 = sld [smem:[#allocation2 + $0x1e]]
        %v210 = vstv %s209
        %v211 = vmul.f32 %v210, %v208
        %s212 = sld [smem:[#allocation2 + $0x1f]]
        %v213 = vstv %s212
        %v214 = vmul.f32 %v213, %v208
        %s215 = sld [smem:[#allocation2 + $0x1]]
        %v216 = vstv %s215
        %v217 = vmul.f32 %v216, %v195
        %s218 = sld [smem:[#allocation2 + $0xb]]
        %v219 = vstv %s218
        %v220 = vmul.f32 %v219, %v197
        %v221 = vadd.f32 %v217, %v220
        %s222 = sld [smem:[#allocation2 + $0x15]]
        %v223 = vstv %s222
        %v224 = vadd.f32 %v221, %v223
        %v225 = vmax.f32 %v224, 0.0
        %s226 = sld [smem:[#allocation2 + $0x20]]
        %v227 = vstv %s226
        %v228 = vmul.f32 %v227, %v225
        %s229 = sld [smem:[#allocation2 + $0x21]]
        %v230 = vstv %s229
        %v231 = vmul.f32 %v230, %v225
        %v232 = vadd.f32 %v211, %v228
        %v233 = vadd.f32 %v214, %v231
        %s234 = sld [smem:[#allocation2 + $0x2]]
        %v235 = vstv %s234
        %v236 = vmul.f32 %v235, %v195
        %s237 = sld [smem:[#allocation2 + $0xc]]
        %v238 = vstv %s237
        %v239 = vmul.f32 %v238, %v197
        %v240 = vadd.f32 %v236, %v239
        %s241 = sld [smem:[#allocation2 + $0x16]]
        %v242 = vstv %s241
        %v243 = vadd.f32 %v240, %v242
        %v244 = vmax.f32 %v243, 0.0
        %s245 = sld [smem:[#allocation2 + $0x22]]
        %v246 = vstv %s245
        %v247 = vmul.f32 %v246, %v244
        %s248 = sld [smem:[#allocation2 + $0x23]]
        %v249 = vstv %s248
        %v250 = vmul.f32 %v249, %v244
        %v251 = vadd.f32 %v232, %v247
        %v252 = vadd.f32 %v233, %v250
        %s253 = sld [smem:[#allocation2 + $0x3]]
        %v254 = vstv %s253
        %v255 = vmul.f32 %v254, %v195
        %s256 = sld [smem:[#allocation2 + $0xd]]
        %v257 = vstv %s256
        %v258 = vmul.f32 %v257, %v197
        %v259 = vadd.f32 %v255, %v258
        %s260 = sld [smem:[#allocation2 + $0x17]]
        %v261 = vstv %s260
        %v262 = vadd.f32 %v259, %v261
        %v263 = vmax.f32 %v262, 0.0
        %s264 = sld [smem:[#allocation2 + $0x24]]
        %v265 = vstv %s264
        %v266 = vmul.f32 %v265, %v263
        %s267 = sld [smem:[#allocation2 + $0x25]]
        %v268 = vstv %s267
        %v269 = vmul.f32 %v268, %v263
        %v270 = vadd.f32 %v251, %v266
        %v271 = vadd.f32 %v252, %v269
        %s272 = sld [smem:[#allocation2 + $0x4]]
        %v273 = vstv %s272
        %v274 = vmul.f32 %v273, %v195
        %s275 = sld [smem:[#allocation2 + $0xe]]
        %v276 = vstv %s275
        %v277 = vmul.f32 %v276, %v197
        %v278 = vadd.f32 %v274, %v277
        %s279 = sld [smem:[#allocation2 + $0x18]]
        %v280 = vstv %s279
        %v281 = vadd.f32 %v278, %v280
        %v282 = vmax.f32 %v281, 0.0
        %s283 = sld [smem:[#allocation2 + $0x26]]
        %v284 = vstv %s283
        %v285 = vmul.f32 %v284, %v282
        %s286 = sld [smem:[#allocation2 + $0x27]]
        %v287 = vstv %s286
        %v288 = vmul.f32 %v287, %v282
        %v289 = vadd.f32 %v270, %v285
        %v290 = vadd.f32 %v271, %v288
        %s291 = sld [smem:[#allocation2 + $0x5]]
        %v292 = vstv %s291
        %v293 = vmul.f32 %v292, %v195
        %s294 = sld [smem:[#allocation2 + $0xf]]
        %v295 = vstv %s294
        %v296 = vmul.f32 %v295, %v197
        %v297 = vadd.f32 %v293, %v296
        %s298 = sld [smem:[#allocation2 + $0x19]]
        %v299 = vstv %s298
        %v300 = vadd.f32 %v297, %v299
        %v301 = vmax.f32 %v300, 0.0
        %s302 = sld [smem:[#allocation2 + $0x28]]
        %v303 = vstv %s302
        %v304 = vmul.f32 %v303, %v301
        %s305 = sld [smem:[#allocation2 + $0x29]]
        %v306 = vstv %s305
        %v307 = vmul.f32 %v306, %v301
        %v308 = vadd.f32 %v289, %v304
        %v309 = vadd.f32 %v290, %v307
        %s310 = sld [smem:[#allocation2 + $0x6]]
        %v311 = vstv %s310
        %v312 = vmul.f32 %v311, %v195
        %s313 = sld [smem:[#allocation2 + $0x10]]
        %v314 = vstv %s313
        %v315 = vmul.f32 %v314, %v197
        %v316 = vadd.f32 %v312, %v315
        %s317 = sld [smem:[#allocation2 + $0x1a]]
        %v318 = vstv %s317
        %v319 = vadd.f32 %v316, %v318
        %v320 = vmax.f32 %v319, 0.0
        %s321 = sld [smem:[#allocation2 + $0x2a]]
        %v322 = vstv %s321
        %v323 = vmul.f32 %v322, %v320
        %s324 = sld [smem:[#allocation2 + $0x2b]]
        %v325 = vstv %s324
        %v326 = vmul.f32 %v325, %v320
        %v327 = vadd.f32 %v308, %v323
        %v328 = vadd.f32 %v309, %v326
        %s329 = sld [smem:[#allocation2 + $0x7]]
        %v330 = vstv %s329
        %v331 = vmul.f32 %v330, %v195
        %s332 = sld [smem:[#allocation2 + $0x11]]
        %v333 = vstv %s332
        %v334 = vmul.f32 %v333, %v197
        %v335 = vadd.f32 %v331, %v334
        %s336 = sld [smem:[#allocation2 + $0x1b]]
        %v337 = vstv %s336
        %v338 = vadd.f32 %v335, %v337
        %v339 = vmax.f32 %v338, 0.0
        %s340 = sld [smem:[#allocation2 + $0x2c]]
        %v341 = vstv %s340
        %v342 = vmul.f32 %v341, %v339
        %s343 = sld [smem:[#allocation2 + $0x2d]]
        %v344 = vstv %s343
        %v345 = vmul.f32 %v344, %v339
        %v346 = vadd.f32 %v327, %v342
        %v347 = vadd.f32 %v328, %v345
        %s348 = sld [smem:[#allocation2 + $0x8]]
        %v349 = vstv %s348
        %v350 = vmul.f32 %v349, %v195
        %s351 = sld [smem:[#allocation2 + $0x12]]
        %v352 = vstv %s351
        %v353 = vmul.f32 %v352, %v197
        %v354 = vadd.f32 %v350, %v353
        %s355 = sld [smem:[#allocation2 + $0x1c]]
        %v356 = vstv %s355
        %v357 = vadd.f32 %v354, %v356
        %v358 = vmax.f32 %v357, 0.0
        %s359 = sld [smem:[#allocation2 + $0x2e]]
        %v360 = vstv %s359
        %v361 = vmul.f32 %v360, %v358
        %s362 = sld [smem:[#allocation2 + $0x2f]]
        %v363 = vstv %s362
        %v364 = vmul.f32 %v363, %v358
        %v365 = vadd.f32 %v346, %v361
        %v366 = vadd.f32 %v347, %v364
        %s367 = sld [smem:[#allocation2 + $0x9]]
        %v368 = vstv %s367
        %v369 = vmul.f32 %v368, %v195
        %s370 = sld [smem:[#allocation2 + $0x13]]
        %v371 = vstv %s370
        %v372 = vmul.f32 %v371, %v197
        %v373 = vadd.f32 %v369, %v372
        %s374 = sld [smem:[#allocation2 + $0x1d]]
        %v375 = vstv %s374
        %v376 = vadd.f32 %v373, %v375
        %v377 = vmax.f32 %v376, 0.0
        %s378 = sld [smem:[#allocation2 + $0x30]]
        %v379 = vstv %s378
        %v380 = vmul.f32 %v379, %v377
        %s381 = sld [smem:[#allocation2 + $0x31]]
        %v382 = vstv %s381
        %v383 = vmul.f32 %v382, %v377
        %v384 = vadd.f32 %v365, %v380
        %v385 = vadd.f32 %v366, %v383
        %s386 = sld [smem:[#allocation2 + $0x32]]
        %v387 = vstv %s386
        %v388 = vadd.f32 %v384, %v387
        %v389 = vmax.f32 %v388, 0.0
        %s390 = sld [smem:[#allocation2 + $0x33]]
        %v391 = vstv %s390
        %v392 = vadd.f32 %v385, %v391
        %v393 = vmax.f32 %v392, 0.0
        %s394 = sld [smem:[#allocation2 + $0x34]]
        %v395 = vstv %s394
        %v396 = vmul.f32 %v395, %v389
        %s397 = sld [smem:[#allocation2 + $0x35]]
        %v398 = vstv %s397
        %v399 = vmul.f32 %v398, %v393
        %v400 = vadd.f32 %v396, %v399
        %s401 = sld [smem:[#allocation2 + $0x36]]
        %v402 = vstv %s401
        %v403 = vadd.f32 %v400, %v402
        %v404 = vand.u32 2147483647, %v403
        %vm405 = vcmp.le.f32.partialorder %v404, 0.7853982
        %vm406 = vcmp.lt.s32.totalorder %v403, 0
        %v407 = vand.u32 %v403, 2139095040
        %v408 = vshrl.u32 %v407, 23
        %v409 = vsub.s32 %v408, 127
        %v410 = vand.u32 2147483647, %v403
        %v411 = vand.u32 %v410, 8388607
        %v412 = vor.u32 %v411, 8388608
        %v413 = vsub.s32 0, %v412
        %v414 = vadd.s32 %v409, 1
        %vm415 = vcmp.gt.s32.totalorder %v414, 0
        %v416 = vsel %vm415, %v414, 0
        %v417 = vshrl.u32 %v416, 5
        %v418 = vand.u32 %v416, 31
        %v419 = vsub.s32 32, %v418
        %v420 = vshrl.u32 683565275, %v419
        %v421 = vshll.u32 683565275, %v418
        %v422 = vshrl.u32 2475754826, %v419
        %v423 = vor.u32 %v421, %v422
        %v424 = vshll.u32 2475754826, %v418
        %v425 = vshrl.u32 2131351028, %v419
        %v426 = vor.u32 %v424, %v425
        %v427 = vshll.u32 2131351028, %v418
        %v428 = vshrl.u32 2102212464, %v419
        %v429 = vor.u32 %v427, %v428
        %v430 = vshll.u32 2102212464, %v418
        %v431 = vshrl.u32 920167782, %v419
        %v432 = vor.u32 %v430, %v431
        %v433 = vshll.u32 920167782, %v418
        %v434 = vshrl.u32 1326507024, %v419
        %v435 = vor.u32 %v433, %v434
        %vm436 = vcmp.lt.s32.totalorder %v417, 1
        %vm437 = vcmp.lt.s32.totalorder %v417, 2
        %vm438 = vcmp.lt.s32.totalorder %v417, 3
        %vm439 = vcmp.lt.s32.totalorder %v417, 4
        %v440 = vsel %vm436, %v420, %v423
        %v441 = vsel %vm439, %v429, 2102212464
        %v442 = vsel %vm438, %v426, %v441
        %v443 = vsel %vm437, %v440, %v442
        %v444 = vsel %vm436, %v423, %v426
        %v445 = vsel %vm439, %v432, 920167782
        %v446 = vsel %vm438, %v429, %v445
        %v447 = vsel %vm437, %v444, %v446
        %v448 = vsel %vm436, %v426, %v429
        %v449 = vsel %vm439, %v435, 1326507024
        %v450 = vsel %vm438, %v432, %v449
        %v451 = vsel %vm437, %v448, %v450
        %v452 = vshll.u32 %v412, 8
        %v453 = vmul.u32.u64.compose %v452, %v451
        %v454 = vextract.low.u32 %v453
        %v455 = vextract.high.u32 %v453
        %v456 = vmul.u32.u64.compose %v452, %v447
        %v457 = vextract.low.u32 %v456
        %v458 = vextract.high.u32 %v456
        %v459 = vmul.u32 %v452, %v443
        %v460 = vadd.s32 %v455, %v457
        %vm461 = vc.u32 %v455, %v457
        %v462 = vadd.s32 %v458, 1
        %v463 = vsel %vm461, %v462, %v458
        %v464 = vadd.s32 %v459, %v463
        %v465 = vadd.s32 %v464, 536870912
        %v466 = vshrl.u32 %v465, 30
        %v467 = vshll.u32 %v466, 30
        %v468 = vsub.s32 %v464, %v467
        %vm469 = vcmp.lt.s32.totalorder %v468, 0
        %v470 = vsub.s32 0, %v468
        %v471 = vsel %vm469, %v470, %v468
        %v472 = vclz %v471
        %v473 = vsub.s32 %v472, 2
        %vm474 = vcmp.gt.s32.totalorder 0, %v473
        %v475 = vsel %vm474, 0, %v473
        %v476 = vsub.s32 32, %v475
        %v477 = vshll.u32 %v468, %v475
        %v478 = vshrl.u32 %v460, %v476
        %v479 = vor.u32 %v477, %v478
        %v480 = vsub.s32 4294967266, %v475
        %v481 = vadd.s32 %v480, 127
        %v482 = vshll.u32 %v481, 23
        %v483 = vor.u32 4788187, %v482
        %v484 = vand.u32 2147483647, %v483
        %v486 = vcvt.s32.f32 %v479
        %v487 = vmul.f32 %v486, %v484
        %v488 = vxor.u32 %v487, 2147483648
        %v489 = vsel %vm406, %v488, %v487
        %v490 = vsub.s32 4, %v466
        %v491 = vsel %vm406, %v490, %v466
        %v492 = vsel %vm405, %v403, %v489
        %v493 = vsel %vm405, 0, %v491
        %v494 = vcosq.f32.pop %v492
        %v495 = vsinq.f32.pop %v492
        %vm496 = vweird.f32 %v403
        %v497 = vand.u32 %v493, 3
        %vm498 = vcmp.lt.s32.totalorder %v497, 2
        %vm499 = vcmp.eq.s32.totalorder %v497, 0
        %v500 = vxor.u32 %v495, 2147483648
        %v501 = vsel %vm499, %v494, %v500
        %vm502 = vcmp.eq.s32.totalorder %v497, 2
        %v503 = vxor.u32 %v494, 2147483648
        %v504 = vsel %vm502, %v503, %v495
        %v505 = vsel %vm498, %v501, %v504
        %v506 = vsel %vm496, nan, %v505
        %507 = vst [vmem:[%s194] sm:$0xff] %v506
        %s508 = sand.u32 %s72, 1
        %s509 = scalar_lea.sflag [#allocation3], %s508
        %s510 = sand.u32 %s72, 1
        %s511 = smul.addr %s510, 8
        %s512 = scalar_lea.vmem [#allocation6], %s511
        // Predicated region
        $region71: #{net_forward.1} parent=61 // pred_check
          %p513 = pneg %p82
        $region72: #{net_forward.1} parent=61 // pred_check_branch
          %515 = sbr.rel (%p513) target = $region74
        $region73: #{net_forward.1} parent=61 // pred_region
          %s517 = ssub.s32 128, 128
          %518 = vsyncadd %s509, %s517
          %s519 = smul.addr %s17, 128
          %s520 = scalar_lea.hbm %s2, %s519
          %s522 = sshll.u32 %s512, 4
          %s523 = int_to_ptr.vmem [resolvable:$true] %s522
          %525 = dma.vmem_to_hbm [thread:$0]  %s523, 128, %s520, %s509
        $region74: #{net_forward.1} parent=61 // pred_fallthru
          _
      $region62: #{net_forward.1} parent=5 // pred_fallthru
        _
      %p526 = scmp.le.s32.totalorder 2, %s12
      // Predicated region
      $region75: #{net_forward.1} parent=5 // pred_check
        %p527 = pneg %p526
      $region76: #{net_forward.1} parent=5 // pred_check_branch
        %529 = sbr.rel (%p527) target = $region78
      $region77: #{net_forward.1} parent=5 // pred_region
        %s530 = ssub.s32 %s12, 2
        // Predicated region
        $region79: #{net_forward.1} parent=77 // pred_check
          %p531 = pneg %p88
        $region80: #{net_forward.1} parent=77 // pred_check_branch
          %533 = sbr.rel (%p531) target = $region82
        $region81: #{net_forward.1} parent=77 // pred_region
          %s534 = sand.u32 %s73, 1
          %s535 = scalar_lea.sflag [#allocation3], %s534
          %s536 = sand.u32 %s73, 1
          %s537 = smul.addr %s536, 8
          %s538 = scalar_lea.vmem [#allocation6], %s537
          %539 = dma.done %s535, 128
        $region82: #{net_forward.1} parent=77 // pred_fallthru
          _
      $region78: #{net_forward.1} parent=5 // pred_fallthru
        _
    $region6: #{net_forward.1} parent=1 // loop_footer
      %s16 = sadd.s32 1, %s12
    $region7: #{net_forward.1} parent=1 // loop_footer_branch
      %11 = sbr.rel target = $region3
    $region8: #{net_forward.1} parent=1 // loop_exit
      _
    %540 = vsyncpa [#allocation3], 1
    %s541 = scalar_lea.sflag [#allocation3], 1
    %542 = vsyncpa %s541, 1
    %543 = vsyncpa [#allocation4], 1
    %s544 = scalar_lea.sflag [#allocation4], 1
    %545 = vsyncpa %s544, 1

</llo_original>
